<compile_context>
chip_gen: v7x
topology: tpu7x:2x2x1
jax: 0.10.0
libtpu: 0.0.40
codegen_flags: <defaults>
</compile_context>

<pallas_src>
import functools

import jax
import jax.numpy as jnp
from jax.experimental import pallas as pl
from jax.experimental.pallas import tpu as pltpu

_BN_EPS = 1e-5


# ----------------------------------------------------------------------------
# Fused kernel for the whole network.
#
# `layer_specs` is a static tuple, one entry per layer:
#     (w_row, d_in, d_out, p_row, beta_row, has_bn, has_relu, has_softmax,
#      is_latent)
# where w_row / p_row / beta_row are row offsets into the packed parameter
# slab (p_row is gamma's row when has_bn, else the bias row).
# Kernel ref order: x, params_slab, out, latent.
# ----------------------------------------------------------------------------
def _make_network_kernel(layer_specs, eps=_BN_EPS):
    def kernel(x_ref, p_ref, out_ref, latent_ref):
        h = x_ref[...]                                  # (N, Din), already f32
        for (w_row, d_in, d_out, p_row, beta_row,
             has_bn, has_relu, has_softmax, is_latent) in layer_specs:
            # Static slices into the packed slab — zero-cost views.
            w = p_ref[w_row:w_row + d_in, :d_out]       # (Din, Dout)
            y = jnp.dot(h, w, preferred_element_type=jnp.float32)

            if has_bn:
                # Training-mode BatchNorm1d over the batch axis (biased var).
                # Linear bias omitted on purpose: mean subtraction cancels it.
                gamma = p_ref[p_row:p_row + 1, :d_out]          # (1, Dout)
                beta = p_ref[beta_row:beta_row + 1, :d_out]     # (1, Dout)
                mean = jnp.mean(y, axis=0, keepdims=True)
                ctr = y - mean
                var = jnp.mean(ctr * ctr, axis=0, keepdims=True)
                scale = gamma * jax.lax.rsqrt(var + eps)        # fold gamma
                y = ctr * scale + beta
            else:
                b = p_ref[p_row:p_row + 1, :d_out]              # (1, Dout)
                y = y + b

            if has_relu:
                y = jnp.maximum(y, 0.0)

            if has_softmax:
                # nn.Softmax(dim=1): exact divide for parity with PyTorch.
                m = jnp.max(y, axis=1, keepdims=True)
                e = jnp.exp(y - m)
                y = e / jnp.sum(e, axis=1, keepdims=True)

            if is_latent:
                latent_ref[...] = y.astype(latent_ref.dtype)
            h = y

        out_ref[...] = h.astype(out_ref.dtype)

    return kernel


# ----------------------------------------------------------------------------
# Parameter init (mirrors nn.Linear / nn.BatchNorm1d defaults), packed into a
# single contiguous fp32 slab.  Weights are stored pre-transposed (Din, Dout).
# ----------------------------------------------------------------------------
def _init_linear(key, d_in, d_out):
    kw, kb = jax.random.split(key)
    bound = 1.0 / jnp.sqrt(jnp.float32(d_in))
    w = jax.random.uniform(kw, (d_out, d_in), jnp.float32, -bound, bound)
    b = jax.random.uniform(kb, (d_out,), jnp.float32, -bound, bound)
    return jnp.transpose(w), b            # (Din, Dout), (Dout,)


def _align8(r):
    return ((r + 7) // 8) * 8


def init_prediction_params(key, prediction_dim, *, batchnorm=True):
    """Returns (layer_specs, param_slab).

    layer_specs : static tuple of
        (w_row, d_in, d_out, p_row, beta_row, has_bn, has_relu, has_softmax,
         is_latent)
    param_slab  : (rows, width) fp32 array; rows 8-aligned per parameter,
        width = max feature dim rounded up to a multiple of 128 (lane-dense).
    """
    depth = len(prediction_dim) - 1

    # Layer topology: encoder (dims[i] -> dims[i+1]) then decoder
    # (dims[i] -> dims[i-1]); the last decoder layer has no BN/ReLU, just
    # Softmax.
    layers = []
    for i in range(depth):
        layers.append((prediction_dim[i], prediction_dim[i + 1],
                       batchnorm, True, False, i == depth - 1))
    for i in range(depth, 0, -1):
        is_last = (i == 1)
        layers.append((prediction_dim[i], prediction_dim[i - 1],
                       batchnorm and not is_last, not is_last, is_last, False))

    max_d = max(prediction_dim)
    width = ((max_d + 127) // 128) * 128

    specs = []
    pieces = []                       # (row, array) placements
    row = 0
    for (d_in, d_out, has_bn, has_relu, has_softmax, is_latent) in layers:
        key, sub = jax.random.split(key)
        w_t, b = _init_linear(sub, d_in, d_out)

        w_row = row
        pieces.append((w_row, w_t))
        row = _align8(row + d_in)

        p_row = row
        if has_bn:
            pieces.append((p_row, jnp.ones((1, d_out), jnp.float32)))   # gamma
            row = _align8(row + 1)
            beta_row = row
            pieces.append((beta_row, jnp.zeros((1, d_out), jnp.float32)))
            row = _align8(row + 1)
        else:
            pieces.append((p_row, b.reshape(1, d_out)))                 # bias
            beta_row = -1
            row = _align8(row + 1)

        specs.append((w_row, d_in, d_out, p_row, beta_row,
                      has_bn, has_relu, has_softmax, is_latent))

    total_rows = _align8(row)
    slab = jnp.zeros((total_rows, width), jnp.float32)
    for (r, arr) in pieces:
        slab = slab.at[r:r + arr.shape[0], :arr.shape[1]].set(
            arr.astype(jnp.float32))

    return tuple(specs), slab


# ----------------------------------------------------------------------------
# Forward pass: one fused, grid-less pallas_call.  Returns (output, latent).
# ----------------------------------------------------------------------------
@functools.partial(jax.jit, static_argnames=("layer_specs",))
def prediction_forward(x, param_slab, *, layer_specs):
    n = x.shape[0]
    d_out = layer_specs[-1][2]                      # decoder ends at input dim
    d_latent = next(s[2] for s in layer_specs if s[8])

    # Advisory cost estimate so XLA schedules the call tightly.
    flops = sum(2 * n * s[1] * s[2] for s in layer_specs)
    transcendentals = n * d_out                     # softmax exp (dominant)
    bytes_accessed = 4 * (x.size + param_slab.size + n * d_out + n * d_latent)

    kernel = _make_network_kernel(layer_specs)
    vmem = pl.BlockSpec(memory_space=pltpu.MemorySpace.VMEM)

    output, latent = pl.pallas_call(
        kernel,
        out_shape=(jax.ShapeDtypeStruct((n, d_out), jnp.float32),
                   jax.ShapeDtypeStruct((n, d_latent), jnp.float32)),
        in_specs=[vmem, vmem],
        out_specs=(vmem, vmem),
        cost_estimate=pl.CostEstimate(flops=flops,
                                      transcendentals=transcendentals,
                                      bytes_accessed=bytes_accessed),
    )(x, param_slab)
    return output, latent


# ----------------------------------------------------------------------------
# Pure-JAX reference (same math) for a sanity check.
# ----------------------------------------------------------------------------
def _reference_forward(x, param_slab, layer_specs):
    h = x.astype(jnp.float32)
    latent = None
    for (w_row, d_in, d_out, p_row, beta_row,
         has_bn, has_relu, has_softmax, is_latent) in layer_specs:
        w = param_slab[w_row:w_row + d_in, :d_out]
        y = h @ w
        if has_bn:
            gamma = param_slab[p_row:p_row + 1, :d_out]
            beta = param_slab[beta_row:beta_row + 1, :d_out]
            mean = jnp.mean(y, axis=0, keepdims=True)
            var = jnp.mean((y - mean) ** 2, axis=0, keepdims=True)
            y = (y - mean) * (gamma * jax.lax.rsqrt(var + _BN_EPS)) + beta
        else:
            y = y + param_slab[p_row:p_row + 1, :d_out]
        if has_relu:
            y = jnp.maximum(y, 0.0)
        if has_softmax:
            y = jax.nn.softmax(y, axis=1)
        if is_latent:
            latent = y
        h = y
    return h, latent


# ----------------------------------------------------------------------------
if __name__ == "__main__":
    prediction_dim = (32, 64, 16)   # input dim 32, hidden 64, latent 16
    batch = 8

    key = jax.random.PRNGKey(0)
    key_params, key_x = jax.random.split(key)
    layer_specs, param_slab = init_prediction_params(key_params, prediction_dim,
                                                     batchnorm=True)
    x = jax.random.normal(key_x, (batch, prediction_dim[0]), jnp.float32)

    output, latent = prediction_forward(x, param_slab, layer_specs=layer_specs)
    jax.block_until_ready((output, latent))

    assert output.shape == (batch, prediction_dim[0])
    assert latent.shape == (batch, prediction_dim[-1])
    # Softmax rows sum to 1 (exact divide in kernel).
    assert jnp.allclose(jnp.sum(output, axis=1), 1.0, atol=1e-4)

    ref_out, ref_lat = _reference_forward(x, param_slab, layer_specs)
    assert jnp.allclose(latent, ref_lat, atol=1e-4, rtol=1e-4)
    assert jnp.allclose(output, ref_out, atol=1e-4, rtol=1e-4)

    print("KERNEL_OK")
</pallas_src>

<mosaic_0001>
module attributes {stable_mosaic.version = 11 : i64} {
  func.func @kernel(%arg0: memref<8x32xf32, #tpu.memory_space<vmem>>, %arg1: memref<232x128xf32, #tpu.memory_space<vmem>>, %arg2: memref<8x32xf32, #tpu.memory_space<vmem>>, %arg3: memref<8x16xf32, #tpu.memory_space<vmem>>) attributes {dimension_semantics = [], scalar_prefetch = 0 : i64, scratch_operands = 0 : i64, tpu.core_type = #tpu.core_type<tc>} {
    %c0 = arith.constant 0 : index
    %c0_0 = arith.constant 0 : index
    %0 = vector.load %arg0[%c0, %c0_0] : memref<8x32xf32, #tpu.memory_space<vmem>>, vector<8x32xf32>
    %c0_1 = arith.constant 0 : index
    %c0_2 = arith.constant 0 : index
    %1 = vector.load %arg1[%c0_1, %c0_2] : memref<232x128xf32, #tpu.memory_space<vmem>>, vector<32x64xf32>
    %cst = arith.constant dense<0.000000e+00> : vector<8x64xf32>
    %2 = tpu.matmul %0, %1, %cst {dimension_numbers = #tpu.dot_dimension_numbers<[1], [0], [0], [1], [0, 0, 1, 1], [], []>} : vector<8x32xf32>, vector<32x64xf32>, vector<8x64xf32> -> vector<8x64xf32>
    %c32 = arith.constant 32 : index
    %c0_3 = arith.constant 0 : index
    %3 = vector.load %arg1[%c32, %c0_3] : memref<232x128xf32, #tpu.memory_space<vmem>>, vector<1x64xf32>
    %c40 = arith.constant 40 : index
    %c0_4 = arith.constant 0 : index
    %4 = vector.load %arg1[%c40, %c0_4] : memref<232x128xf32, #tpu.memory_space<vmem>>, vector<1x64xf32>
    %cst_5 = arith.constant dense<0.000000e+00> : vector<64xf32>
    %5 = vector.multi_reduction <add>, %2, %cst_5 [0] : vector<8x64xf32> to vector<64xf32>
    %6 = vector.shape_cast %5 : vector<64xf32> to vector<1x64xf32>
    %cst_6 = arith.constant 8.000000e+00 : f32
    %7 = vector.broadcast %cst_6 : f32 to vector<1x64xf32>
    %8 = arith.divf %6, %7 : vector<1x64xf32>
    %9 = vector.broadcast %8 : vector<1x64xf32> to vector<8x64xf32>
    %10 = arith.subf %2, %9 : vector<8x64xf32>
    %11 = arith.mulf %10, %10 : vector<8x64xf32>
    %cst_7 = arith.constant dense<0.000000e+00> : vector<64xf32>
    %12 = vector.multi_reduction <add>, %11, %cst_7 [0] : vector<8x64xf32> to vector<64xf32>
    %13 = vector.shape_cast %12 : vector<64xf32> to vector<1x64xf32>
    %cst_8 = arith.constant 8.000000e+00 : f32
    %14 = vector.broadcast %cst_8 : f32 to vector<1x64xf32>
    %15 = arith.divf %13, %14 : vector<1x64xf32>
    %cst_9 = arith.constant 9.99999974E-6 : f32
    %16 = vector.broadcast %cst_9 : f32 to vector<1x64xf32>
    %17 = arith.addf %15, %16 : vector<1x64xf32>
    %18 = math.rsqrt %17 : vector<1x64xf32>
    %19 = arith.mulf %3, %18 : vector<1x64xf32>
    %20 = vector.broadcast %19 : vector<1x64xf32> to vector<8x64xf32>
    %21 = arith.mulf %10, %20 : vector<8x64xf32>
    %22 = vector.broadcast %4 : vector<1x64xf32> to vector<8x64xf32>
    %23 = arith.addf %21, %22 : vector<8x64xf32>
    %cst_10 = arith.constant 0.000000e+00 : f32
    %24 = vector.broadcast %cst_10 : f32 to vector<8x64xf32>
    %25 = arith.maximumf %23, %24 : vector<8x64xf32>
    %c48 = arith.constant 48 : index
    %c0_11 = arith.constant 0 : index
    %26 = vector.load %arg1[%c48, %c0_11] : memref<232x128xf32, #tpu.memory_space<vmem>>, vector<64x16xf32>
    %cst_12 = arith.constant dense<0.000000e+00> : vector<8x16xf32>
    %27 = tpu.matmul %25, %26, %cst_12 {dimension_numbers = #tpu.dot_dimension_numbers<[1], [0], [0], [1], [0, 0, 1, 1], [], []>} : vector<8x64xf32>, vector<64x16xf32>, vector<8x16xf32> -> vector<8x16xf32>
    %c112 = arith.constant 112 : index
    %c0_13 = arith.constant 0 : index
    %28 = vector.load %arg1[%c112, %c0_13] : memref<232x128xf32, #tpu.memory_space<vmem>>, vector<1x16xf32>
    %c120 = arith.constant 120 : index
    %c0_14 = arith.constant 0 : index
    %29 = vector.load %arg1[%c120, %c0_14] : memref<232x128xf32, #tpu.memory_space<vmem>>, vector<1x16xf32>
    %cst_15 = arith.constant dense<0.000000e+00> : vector<16xf32>
    %30 = vector.multi_reduction <add>, %27, %cst_15 [0] : vector<8x16xf32> to vector<16xf32>
    %31 = vector.shape_cast %30 : vector<16xf32> to vector<1x16xf32>
    %cst_16 = arith.constant 8.000000e+00 : f32
    %32 = vector.broadcast %cst_16 : f32 to vector<1x16xf32>
    %33 = arith.divf %31, %32 : vector<1x16xf32>
    %34 = vector.broadcast %33 : vector<1x16xf32> to vector<8x16xf32>
    %35 = arith.subf %27, %34 : vector<8x16xf32>
    %36 = arith.mulf %35, %35 : vector<8x16xf32>
    %cst_17 = arith.constant dense<0.000000e+00> : vector<16xf32>
    %37 = vector.multi_reduction <add>, %36, %cst_17 [0] : vector<8x16xf32> to vector<16xf32>
    %38 = vector.shape_cast %37 : vector<16xf32> to vector<1x16xf32>
    %cst_18 = arith.constant 8.000000e+00 : f32
    %39 = vector.broadcast %cst_18 : f32 to vector<1x16xf32>
    %40 = arith.divf %38, %39 : vector<1x16xf32>
    %cst_19 = arith.constant 9.99999974E-6 : f32
    %41 = vector.broadcast %cst_19 : f32 to vector<1x16xf32>
    %42 = arith.addf %40, %41 : vector<1x16xf32>
    %43 = math.rsqrt %42 : vector<1x16xf32>
    %44 = arith.mulf %28, %43 : vector<1x16xf32>
    %45 = vector.broadcast %44 : vector<1x16xf32> to vector<8x16xf32>
    %46 = arith.mulf %35, %45 : vector<8x16xf32>
    %47 = vector.broadcast %29 : vector<1x16xf32> to vector<8x16xf32>
    %48 = arith.addf %46, %47 : vector<8x16xf32>
    %cst_20 = arith.constant 0.000000e+00 : f32
    %49 = vector.broadcast %cst_20 : f32 to vector<8x16xf32>
    %50 = arith.maximumf %48, %49 : vector<8x16xf32>
    %c0_21 = arith.constant 0 : index
    %c0_22 = arith.constant 0 : index
    %51 = vector.load %arg3[%c0_21, %c0_22] : memref<8x16xf32, #tpu.memory_space<vmem>>, vector<8x16xf32>
    tpu.vector_store %arg3[%c0_21, %c0_22], %50 {strides = array<i32>} : memref<8x16xf32, #tpu.memory_space<vmem>>, vector<8x16xf32>,
    %c128 = arith.constant 128 : index
    %c0_23 = arith.constant 0 : index
    %52 = vector.load %arg1[%c128, %c0_23] : memref<232x128xf32, #tpu.memory_space<vmem>>, vector<16x64xf32>
    %cst_24 = arith.constant dense<0.000000e+00> : vector<8x64xf32>
    %53 = tpu.matmul %50, %52, %cst_24 {dimension_numbers = #tpu.dot_dimension_numbers<[1], [0], [0], [1], [0, 0, 1, 1], [], []>} : vector<8x16xf32>, vector<16x64xf32>, vector<8x64xf32> -> vector<8x64xf32>
    %c144 = arith.constant 144 : index
    %c0_25 = arith.constant 0 : index
    %54 = vector.load %arg1[%c144, %c0_25] : memref<232x128xf32, #tpu.memory_space<vmem>>, vector<1x64xf32>
    %c152 = arith.constant 152 : index
    %c0_26 = arith.constant 0 : index
    %55 = vector.load %arg1[%c152, %c0_26] : memref<232x128xf32, #tpu.memory_space<vmem>>, vector<1x64xf32>
    %cst_27 = arith.constant dense<0.000000e+00> : vector<64xf32>
    %56 = vector.multi_reduction <add>, %53, %cst_27 [0] : vector<8x64xf32> to vector<64xf32>
    %57 = vector.shape_cast %56 : vector<64xf32> to vector<1x64xf32>
    %cst_28 = arith.constant 8.000000e+00 : f32
    %58 = vector.broadcast %cst_28 : f32 to vector<1x64xf32>
    %59 = arith.divf %57, %58 : vector<1x64xf32>
    %60 = vector.broadcast %59 : vector<1x64xf32> to vector<8x64xf32>
    %61 = arith.subf %53, %60 : vector<8x64xf32>
    %62 = arith.mulf %61, %61 : vector<8x64xf32>
    %cst_29 = arith.constant dense<0.000000e+00> : vector<64xf32>
    %63 = vector.multi_reduction <add>, %62, %cst_29 [0] : vector<8x64xf32> to vector<64xf32>
    %64 = vector.shape_cast %63 : vector<64xf32> to vector<1x64xf32>
    %cst_30 = arith.constant 8.000000e+00 : f32
    %65 = vector.broadcast %cst_30 : f32 to vector<1x64xf32>
    %66 = arith.divf %64, %65 : vector<1x64xf32>
    %cst_31 = arith.constant 9.99999974E-6 : f32
    %67 = vector.broadcast %cst_31 : f32 to vector<1x64xf32>
    %68 = arith.addf %66, %67 : vector<1x64xf32>
    %69 = math.rsqrt %68 : vector<1x64xf32>
    %70 = arith.mulf %54, %69 : vector<1x64xf32>
    %71 = vector.broadcast %70 : vector<1x64xf32> to vector<8x64xf32>
    %72 = arith.mulf %61, %71 : vector<8x64xf32>
    %73 = vector.broadcast %55 : vector<1x64xf32> to vector<8x64xf32>
    %74 = arith.addf %72, %73 : vector<8x64xf32>
    %cst_32 = arith.constant 0.000000e+00 : f32
    %75 = vector.broadcast %cst_32 : f32 to vector<8x64xf32>
    %76 = arith.maximumf %74, %75 : vector<8x64xf32>
    %c160 = arith.constant 160 : index
    %c0_33 = arith.constant 0 : index
    %77 = vector.load %arg1[%c160, %c0_33] : memref<232x128xf32, #tpu.memory_space<vmem>>, vector<64x32xf32>
    %cst_34 = arith.constant dense<0.000000e+00> : vector<8x32xf32>
    %78 = tpu.matmul %76, %77, %cst_34 {dimension_numbers = #tpu.dot_dimension_numbers<[1], [0], [0], [1], [0, 0, 1, 1], [], []>} : vector<8x64xf32>, vector<64x32xf32>, vector<8x32xf32> -> vector<8x32xf32>
    %c224 = arith.constant 224 : index
    %c0_35 = arith.constant 0 : index
    %79 = vector.load %arg1[%c224, %c0_35] : memref<232x128xf32, #tpu.memory_space<vmem>>, vector<1x32xf32>
    %80 = vector.broadcast %79 : vector<1x32xf32> to vector<8x32xf32>
    %81 = arith.addf %78, %80 : vector<8x32xf32>
    %cst_36 = arith.constant dense<0xFF800000> : vector<8xf32>
    %82 = vector.multi_reduction <maximumf>, %81, %cst_36 [1] : vector<8x32xf32> to vector<8xf32>
    %83 = vector.shape_cast %82 : vector<8xf32> to vector<8x1xf32>
    %84 = vector.broadcast %83 : vector<8x1xf32> to vector<8x32xf32>
    %85 = arith.subf %81, %84 : vector<8x32xf32>
    %86 = math.exp %85 : vector<8x32xf32>
    %cst_37 = arith.constant dense<0.000000e+00> : vector<8xf32>
    %87 = vector.multi_reduction <add>, %86, %cst_37 [1] : vector<8x32xf32> to vector<8xf32>
    %88 = vector.shape_cast %87 : vector<8xf32> to vector<8x1xf32>
    %89 = vector.broadcast %88 : vector<8x1xf32> to vector<8x32xf32>
    %90 = arith.divf %86, %89 : vector<8x32xf32>
    %c0_38 = arith.constant 0 : index
    %c0_39 = arith.constant 0 : index
    %91 = vector.load %arg2[%c0_38, %c0_39] : memref<8x32xf32, #tpu.memory_space<vmem>>, vector<8x32xf32>
    tpu.vector_store %arg2[%c0_38, %c0_39], %90 {strides = array<i32>} : memref<8x32xf32, #tpu.memory_space<vmem>>, vector<8x32xf32>,
    return
  }
}

</mosaic_0001>

<llo_original>
// kernel: prediction_forward.1
$region0: #{prediction_forward.1}
  #allocation0 [shape = 'u32[]', space=smem, size = 0x4, offset = 0x4, fixed_abs, tag = 'smem constant byte address 0x4 - core index']
  #allocation1 [shape = 'u32[144,128]{1,0:T(1,128)}', space=vmem, size = 0x12000, scoped, tag = 'internal scratch']
  %s0 = inlined_call_operand.hbm [shape: f32[8,32], index: 0, kind: input, shape index: {}]
  %s1 = inlined_call_operand.hbm [shape: f32[232,128], index: 1, kind: input, shape index: {}]
  %s2 = inlined_call_operand.hbm [shape: f32[8,32], index: 2, kind: output, shape index: {0}]
  %s3 = inlined_call_operand.hbm [shape: f32[8,16], index: 3, kind: output, shape index: {1}]
  %4 = xla_tuple %s2, %s3
  %s5 = sld [smem:[#allocation0]]
  $region34: #{prediction_forward.1} parent=0
    _
  %s7 = ssub.s32 1, %s5
  %s8 = scalar_select 0, %s7, %s5
  $region1: #{prediction_forward.1} parent=0
    #allocation2 [shape = 'u8[4096]{0}', space=vmem, size = 0x1000, scoped, tag = 'input window, operand 0, single buffered']
    #allocation3 [shape = 's32[1]{0}', space=sflag, size = 0x4, scoped, tag = 'scoped memory for prediction_forward.1']
    #allocation4 [shape = 's32[1]{0}', space=sflag, size = 0x4, scoped, tag = 'scoped memory for prediction_forward.1']
    #allocation5 [shape = 'u8[118784]{0}', space=vmem, size = 0x1d000, scoped, tag = 'input window, operand 1, single buffered']
    #allocation6 [shape = 's32[1]{0}', space=sflag, size = 0x4, scoped, tag = 'scoped memory for prediction_forward.1']
    #allocation7 [shape = 'u8[4096]{0}', space=vmem, size = 0x1000, scoped, tag = 'output window, operand 0, single buffered']
    #allocation8 [shape = 'u8[4096]{0}', space=vmem, size = 0x1000, scoped, tag = 'output window, operand 1, single buffered']
    #allocation9 [shape = 's32[1]{0}', space=sflag, size = 0x4, scoped, tag = 'scoped memory for prediction_forward.1']
    %9 = vsyncpa [#allocation3], 0
    %10 = vsyncpa [#allocation6], 0
    %11 = vsyncpa [#allocation4], 0
    %12 = vsyncpa [#allocation9], 0
    // Predicated region
    $region2: #{prediction_forward.1} parent=1 // pred_check
      _
    $region3: #{prediction_forward.1} parent=1 // pred_check_branch
      %14 = sbr.rel (0) target = $region5
    $region4: #{prediction_forward.1} parent=1 // pred_region
      %s16 = ssub.s32 128, 128
      %17 = vsyncadd [#allocation3], %s16
      %s19 = sshll.u32 [#allocation2], 4
      %s20 = int_to_ptr.vmem [resolvable:$true] %s19
      %22 = dma.hbm_to_vmem [thread:$0]  %s0, 128, %s20, [#allocation3]
    $region5: #{prediction_forward.1} parent=1 // pred_fallthru
      _
    // Predicated region
    $region6: #{prediction_forward.1} parent=1 // pred_check
      _
    $region7: #{prediction_forward.1} parent=1 // pred_check_branch
      %24 = sbr.rel (0) target = $region9
    $region8: #{prediction_forward.1} parent=1 // pred_region
      %s26 = ssub.s32 3712, 3712
      %27 = vsyncadd [#allocation6], %s26
      %s28 = sshll.u32 [#allocation5], 4
      %s29 = int_to_ptr.vmem [resolvable:$true] %s28
      %34 = dma.hbm_to_vmem [thread:$0]  %s1, 3712, %s29, [#allocation6], 128, 128, 8
    $region9: #{prediction_forward.1} parent=1 // pred_fallthru
      _
    // Predicated region
    $region10: #{prediction_forward.1} parent=1 // pred_check
      _
    $region11: #{prediction_forward.1} parent=1 // pred_check_branch
      %36 = sbr.rel (0) target = $region13
    $region12: #{prediction_forward.1} parent=1 // pred_region
      %37 = dma.done [#allocation3], 128
    $region13: #{prediction_forward.1} parent=1 // pred_fallthru
      _
    // Predicated region
    $region14: #{prediction_forward.1} parent=1 // pred_check
      _
    $region15: #{prediction_forward.1} parent=1 // pred_check_branch
      %39 = sbr.rel (0) target = $region17
    $region16: #{prediction_forward.1} parent=1 // pred_region
      %40 = dma.done [#allocation6], 3712
    $region17: #{prediction_forward.1} parent=1 // pred_fallthru
      _
    %v41 = vld [vmem:[#allocation2] sm:$0xff]
    %v42 = vld [vmem:[#allocation5] sm:$0xff]
    %v43 = vld [vmem:[#allocation5 + $0x8] sm:$0xff]
    %v44 = vld [vmem:[#allocation5 + $0x10] sm:$0xff]
    %v45 = vld [vmem:[#allocation5 + $0x18] sm:$0xff]
    %vm46 = vcmask 261120
    %v48 = vsel %vm46, %v41, 0
    %50 = vmatprep.subr.mxu0 0.0
    %51 = vmatpush1.msra.mxu0 %v42
    %52 = vmatprep.subr.mxu0 0.0
    %53 = vmatpush1.msra.mxu0 %v43
    %54 = vmatprep.subr.mxu0 0.0
    %55 = vmatpush1.msra.mxu0 %v44
    %56 = vmatprep.subr.mxu0 0.0
    %57 = vmatpush1.msra.mxu0 %v45
    %58 = vmatprep.subr.mxu0 0.0
    %59 = vmatpush1.msra.mxu0 0.0
    %60 = vmatprep.subr.mxu0 0.0
    %61 = vmatpush1.msra.mxu0 0.0
    %62 = vmatprep.subr.mxu0 0.0
    %63 = vmatpush1.msra.mxu0 0.0
    %64 = vmatprep.subr.mxu0 0.0
    %65 = vmatpush1.msra.mxu0 0.0
    %66 = vmatprep.subr.mxu0 0.0
    %67 = vmatpush1.msra.mxu0 0.0
    %68 = vmatprep.subr.mxu0 0.0
    %69 = vmatpush1.msra.mxu0 0.0
    %70 = vmatprep.subr.mxu0 0.0
    %71 = vmatpush1.msra.mxu0 0.0
    %72 = vmatprep.subr.mxu0 0.0
    %73 = vmatpush1.msra.mxu0 0.0
    %74 = vmatprep.subr.mxu0 0.0
    %75 = vmatpush1.msra.mxu0 0.0
    %76 = vmatprep.subr.mxu0 0.0
    %77 = vmatpush1.msra.mxu0 0.0
    %78 = vmatprep.subr.mxu0 0.0
    %79 = vmatpush1.msra.mxu0 0.0
    %80 = vmatprep.subr.mxu0 0.0
    %81 = vmatpush1.msra.mxu0 0.0
    %82 = vmatprep.subr.mxu0 0.0
    %83 = vmatpush1.msra.mxu0 0.0
    %84 = vmatprep.subr.mxu0 0.0
    %85 = vmatpush1.msra.mxu0 0.0
    %86 = vmatprep.subr.mxu0 0.0
    %87 = vmatpush1.msra.mxu0 0.0
    %88 = vmatprep.subr.mxu0 0.0
    %89 = vmatpush1.msra.mxu0 0.0
    %90 = vmatprep.subr.mxu0 0.0
    %91 = vmatpush1.msra.mxu0 0.0
    %92 = vmatprep.subr.mxu0 0.0
    %93 = vmatpush1.msra.mxu0 0.0
    %94 = vmatprep.subr.mxu0 0.0
    %95 = vmatpush1.msra.mxu0 0.0
    %96 = vmatprep.subr.mxu0 0.0
    %97 = vmatpush1.msra.mxu0 0.0
    %98 = vmatprep.subr.mxu0 0.0
    %99 = vmatpush1.msra.mxu0 0.0
    %100 = vmatprep.subr.mxu0 0.0
    %101 = vmatpush1.msra.mxu0 0.0
    %102 = vmatprep.subr.mxu0 0.0
    %103 = vmatpush1.msra.mxu0 0.0
    %104 = vmatprep.subr.mxu0 0.0
    %105 = vmatpush1.msra.mxu0 0.0
    %106 = vmatprep.subr.mxu0 0.0
    %107 = vmatpush1.msra.mxu0 0.0
    %108 = vmatprep.subr.mxu0 0.0
    %109 = vmatpush1.msra.mxu0 0.0
    %110 = vmatprep.subr.mxu0 0.0
    %111 = vmatpush1.msra.mxu0 0.0
    %112 = vmatprep.subr.mxu0 0.0
    %113 = vmatpush1.msra.mxu0 0.0
    %114 = vmatprep.mubr.f32.mxu0 0.0
    %115 = vmatmul.mubr.f32.gmra.mrb[0].mxu0 %v48
    %v116 = vpop.f32.mrb[0].mxu0
    %v117 = vadd.f32 0.0, %v116
    %v118 = vpop.f32.mrb[0].mxu0
    %119 = vdwg.mxu0
    %v120 = vld [vmem:[#allocation5 + $0x20] sm:$0x1]
    %v121 = vld [vmem:[#allocation5 + $0x28] sm:$0x1]
    %vm122 = vcmask 523264
    %v123 = vsel %vm122, %v117, 0.0
    %v124 = vrot.slane %v123, 4
    %v125 = vadd.f32 %v123, %v124
    %v126 = vrot.slane %v125, 2
    %v127 = vadd.f32 %v125, %v126
    %v128 = vrot.slane %v127, 1
    %v129 = vadd.f32 %v127, %v128
    %v130 = vrcp.pop 8.0
    %v131 = vmul.f32 %v129, %v130
    %v132 = vsub.f32 %v117, %v131
    %v133 = vmul.f32 %v132, %v132
    %v134 = vsel %vm122, %v133, 0.0
    %v135 = vrot.slane %v134, 4
    %v136 = vadd.f32 %v134, %v135
    %v137 = vrot.slane %v136, 2
    %v138 = vadd.f32 %v136, %v137
    %v139 = vrot.slane %v138, 1
    %v140 = vadd.f32 %v138, %v139
    %v141 = vmul.f32 %v140, %v130
    %v142 = vadd.f32 %v141, 1e-05
    %v143 = vrsqrt.pop %v142
    %v144 = vmul.f32 %v120, %v143
    %v145 = vlaneseq
    %v146 = vshrl.u32 %v145, 7
    %v147 = vsub.s32 0, %v146
    %v148 = vrot.slane %v144, %v147
    %v149 = vmul.f32 %v132, %v148
    %v150 = vlaneseq
    %v151 = vshrl.u32 %v150, 7
    %v152 = vsub.s32 0, %v151
    %v153 = vrot.slane %v121, %v152
    %v154 = vadd.f32 %v149, %v153
    %v155 = vmax.f32 %v154, 0.0
    %v156 = vld [vmem:[#allocation5 + $0x30] sm:$0xff]
    %v157 = vld [vmem:[#allocation5 + $0x38] sm:$0xff]
    %v158 = vld [vmem:[#allocation5 + $0x40] sm:$0xff]
    %v159 = vld [vmem:[#allocation5 + $0x48] sm:$0xff]
    %v160 = vld [vmem:[#allocation5 + $0x50] sm:$0xff]
    %v161 = vld [vmem:[#allocation5 + $0x58] sm:$0xff]
    %v162 = vld [vmem:[#allocation5 + $0x60] sm:$0xff]
    %v163 = vld [vmem:[#allocation5 + $0x68] sm:$0xff]
    %v165 = vsel %vm122, %v155, 0
    %167 = vmatprep.subr.mxu0 0.0
    %168 = vmatpush1.msra.mxu0 %v156
    %169 = vmatprep.subr.mxu0 0.0
    %170 = vmatpush1.msra.mxu0 %v157
    %171 = vmatprep.subr.mxu0 0.0
    %172 = vmatpush1.msra.mxu0 %v158
    %173 = vmatprep.subr.mxu0 0.0
    %174 = vmatpush1.msra.mxu0 %v159
    %175 = vmatprep.subr.mxu0 0.0
    %176 = vmatpush1.msra.mxu0 %v160
    %177 = vmatprep.subr.mxu0 0.0
    %178 = vmatpush1.msra.mxu0 %v161
    %179 = vmatprep.subr.mxu0 0.0
    %180 = vmatpush1.msra.mxu0 %v162
    %181 = vmatprep.subr.mxu0 0.0
    %182 = vmatpush1.msra.mxu0 %v163
    %183 = vmatprep.subr.mxu0 0.0
    %184 = vmatpush1.msra.mxu0 0.0
    %185 = vmatprep.subr.mxu0 0.0
    %186 = vmatpush1.msra.mxu0 0.0
    %187 = vmatprep.subr.mxu0 0.0
    %188 = vmatpush1.msra.mxu0 0.0
    %189 = vmatprep.subr.mxu0 0.0
    %190 = vmatpush1.msra.mxu0 0.0
    %191 = vmatprep.subr.mxu0 0.0
    %192 = vmatpush1.msra.mxu0 0.0
    %193 = vmatprep.subr.mxu0 0.0
    %194 = vmatpush1.msra.mxu0 0.0
    %195 = vmatprep.subr.mxu0 0.0
    %196 = vmatpush1.msra.mxu0 0.0
    %197 = vmatprep.subr.mxu0 0.0
    %198 = vmatpush1.msra.mxu0 0.0
    %199 = vmatprep.subr.mxu0 0.0
    %200 = vmatpush1.msra.mxu0 0.0
    %201 = vmatprep.subr.mxu0 0.0
    %202 = vmatpush1.msra.mxu0 0.0
    %203 = vmatprep.subr.mxu0 0.0
    %204 = vmatpush1.msra.mxu0 0.0
    %205 = vmatprep.subr.mxu0 0.0
    %206 = vmatpush1.msra.mxu0 0.0
    %207 = vmatprep.subr.mxu0 0.0
    %208 = vmatpush1.msra.mxu0 0.0
    %209 = vmatprep.subr.mxu0 0.0
    %210 = vmatpush1.msra.mxu0 0.0
    %211 = vmatprep.subr.mxu0 0.0
    %212 = vmatpush1.msra.mxu0 0.0
    %213 = vmatprep.subr.mxu0 0.0
    %214 = vmatpush1.msra.mxu0 0.0
    %215 = vmatprep.subr.mxu0 0.0
    %216 = vmatpush1.msra.mxu0 0.0
    %217 = vmatprep.subr.mxu0 0.0
    %218 = vmatpush1.msra.mxu0 0.0
    %219 = vmatprep.subr.mxu0 0.0
    %220 = vmatpush1.msra.mxu0 0.0
    %221 = vmatprep.subr.mxu0 0.0
    %222 = vmatpush1.msra.mxu0 0.0
    %223 = vmatprep.subr.mxu0 0.0
    %224 = vmatpush1.msra.mxu0 0.0
    %225 = vmatprep.subr.mxu0 0.0
    %226 = vmatpush1.msra.mxu0 0.0
    %227 = vmatprep.subr.mxu0 0.0
    %228 = vmatpush1.msra.mxu0 0.0
    %229 = vmatprep.subr.mxu0 0.0
    %230 = vmatpush1.msra.mxu0 0.0
    %231 = vmatprep.mubr.f32.mxu0 0.0
    %232 = vmatmul.mubr.f32.gmra.mrb[0].mxu0 %v165
    %v233 = vpop.f32.mrb[0].mxu0
    %v234 = vadd.f32 0.0, %v233
    %v235 = vpop.f32.mrb[0].mxu0
    %236 = vdwg.mxu0
    %v237 = vld [vmem:[#allocation5 + $0x70] sm:$0x1]
    %v238 = vld [vmem:[#allocation5 + $0x78] sm:$0x1]
    %vm239 = vcmask 130048
    %v240 = vsel %vm239, %v234, 0.0
    %v241 = vrot.slane %v240, 4
    %v242 = vadd.f32 %v240, %v241
    %v243 = vrot.slane %v242, 2
    %v244 = vadd.f32 %v242, %v243
    %v245 = vrot.slane %v244, 1
    %v246 = vadd.f32 %v244, %v245
    %v247 = vmul.f32 %v246, %v130
    %v248 = vsub.f32 %v234, %v247
    %v249 = vmul.f32 %v248, %v248
    %v250 = vsel %vm239, %v249, 0.0
    %v251 = vrot.slane %v250, 4
    %v252 = vadd.f32 %v250, %v251
    %v253 = vrot.slane %v252, 2
    %v254 = vadd.f32 %v252, %v253
    %v255 = vrot.slane %v254, 1
    %v256 = vadd.f32 %v254, %v255
    %v257 = vmul.f32 %v256, %v130
    %v258 = vadd.f32 %v257, 1e-05
    %v259 = vrsqrt.pop %v258
    %v260 = vmul.f32 %v237, %v259
    %v261 = vlaneseq
    %v262 = vshrl.u32 %v261, 7
    %v263 = vsub.s32 0, %v262
    %v264 = vrot.slane %v260, %v263
    %v265 = vmul.f32 %v248, %v264
    %v266 = vlaneseq
    %v267 = vshrl.u32 %v266, 7
    %v268 = vsub.s32 0, %v267
    %v269 = vrot.slane %v238, %v268
    %v270 = vadd.f32 %v265, %v269
    %v271 = vmax.f32 %v270, 0.0
    %272 = vst.msk [vmem:[#allocation8] sm:$0xff] %vm239, %v271
    %v273 = vld [vmem:[#allocation5 + $0x80] sm:$0xff]
    %v274 = vld [vmem:[#allocation5 + $0x88] sm:$0xff]
    %v276 = vsel %vm239, %v271, 0
    %278 = vmatprep.subr.mxu0 0.0
    %279 = vmatpush1.msra.mxu0 %v273
    %280 = vmatprep.subr.mxu0 0.0
    %281 = vmatpush1.msra.mxu0 %v274
    %282 = vmatprep.subr.mxu0 0.0
    %283 = vmatpush1.msra.mxu0 0.0
    %284 = vmatprep.subr.mxu0 0.0
    %285 = vmatpush1.msra.mxu0 0.0
    %286 = vmatprep.subr.mxu0 0.0
    %287 = vmatpush1.msra.mxu0 0.0
    %288 = vmatprep.subr.mxu0 0.0
    %289 = vmatpush1.msra.mxu0 0.0
    %290 = vmatprep.subr.mxu0 0.0
    %291 = vmatpush1.msra.mxu0 0.0
    %292 = vmatprep.subr.mxu0 0.0
    %293 = vmatpush1.msra.mxu0 0.0
    %294 = vmatprep.subr.mxu0 0.0
    %295 = vmatpush1.msra.mxu0 0.0
    %296 = vmatprep.subr.mxu0 0.0
    %297 = vmatpush1.msra.mxu0 0.0
    %298 = vmatprep.subr.mxu0 0.0
    %299 = vmatpush1.msra.mxu0 0.0
    %300 = vmatprep.subr.mxu0 0.0
    %301 = vmatpush1.msra.mxu0 0.0
    %302 = vmatprep.subr.mxu0 0.0
    %303 = vmatpush1.msra.mxu0 0.0
    %304 = vmatprep.subr.mxu0 0.0
    %305 = vmatpush1.msra.mxu0 0.0
    %306 = vmatprep.subr.mxu0 0.0
    %307 = vmatpush1.msra.mxu0 0.0
    %308 = vmatprep.subr.mxu0 0.0
    %309 = vmatpush1.msra.mxu0 0.0
    %310 = vmatprep.subr.mxu0 0.0
    %311 = vmatpush1.msra.mxu0 0.0
    %312 = vmatprep.subr.mxu0 0.0
    %313 = vmatpush1.msra.mxu0 0.0
    %314 = vmatprep.subr.mxu0 0.0
    %315 = vmatpush1.msra.mxu0 0.0
    %316 = vmatprep.subr.mxu0 0.0
    %317 = vmatpush1.msra.mxu0 0.0
    %318 = vmatprep.subr.mxu0 0.0
    %319 = vmatpush1.msra.mxu0 0.0
    %320 = vmatprep.subr.mxu0 0.0
    %321 = vmatpush1.msra.mxu0 0.0
    %322 = vmatprep.subr.mxu0 0.0
    %323 = vmatpush1.msra.mxu0 0.0
    %324 = vmatprep.subr.mxu0 0.0
    %325 = vmatpush1.msra.mxu0 0.0
    %326 = vmatprep.subr.mxu0 0.0
    %327 = vmatpush1.msra.mxu0 0.0
    %328 = vmatprep.subr.mxu0 0.0
    %329 = vmatpush1.msra.mxu0 0.0
    %330 = vmatprep.subr.mxu0 0.0
    %331 = vmatpush1.msra.mxu0 0.0
    %332 = vmatprep.subr.mxu0 0.0
    %333 = vmatpush1.msra.mxu0 0.0
    %334 = vmatprep.subr.mxu0 0.0
    %335 = vmatpush1.msra.mxu0 0.0
    %336 = vmatprep.subr.mxu0 0.0
    %337 = vmatpush1.msra.mxu0 0.0
    %338 = vmatprep.subr.mxu0 0.0
    %339 = vmatpush1.msra.mxu0 0.0
    %340 = vmatprep.subr.mxu0 0.0
    %341 = vmatpush1.msra.mxu0 0.0
    %342 = vmatprep.mubr.f32.mxu0 0.0
    %343 = vmatmul.mubr.f32.gmra.mrb[0].mxu0 %v276
    %v344 = vpop.f32.mrb[0].mxu0
    %v345 = vadd.f32 0.0, %v344
    %v346 = vpop.f32.mrb[0].mxu0
    %347 = vdwg.mxu0
    %v348 = vld [vmem:[#allocation5 + $0x90] sm:$0x1]
    %v349 = vld [vmem:[#allocation5 + $0x98] sm:$0x1]
    %v350 = vsel %vm122, %v345, 0.0
    %v351 = vrot.slane %v350, 4
    %v352 = vadd.f32 %v350, %v351
    %v353 = vrot.slane %v352, 2
    %v354 = vadd.f32 %v352, %v353
    %v355 = vrot.slane %v354, 1
    %v356 = vadd.f32 %v354, %v355
    %v357 = vmul.f32 %v356, %v130
    %v358 = vsub.f32 %v345, %v357
    %v359 = vmul.f32 %v358, %v358
    %v360 = vsel %vm122, %v359, 0.0
    %v361 = vrot.slane %v360, 4
    %v362 = vadd.f32 %v360, %v361
    %v363 = vrot.slane %v362, 2
    %v364 = vadd.f32 %v362, %v363
    %v365 = vrot.slane %v364, 1
    %v366 = vadd.f32 %v364, %v365
    %v367 = vmul.f32 %v366, %v130
    %v368 = vadd.f32 %v367, 1e-05
    %v369 = vrsqrt.pop %v368
    %v370 = vmul.f32 %v348, %v369
    %v371 = vlaneseq
    %v372 = vshrl.u32 %v371, 7
    %v373 = vsub.s32 0, %v372
    %v374 = vrot.slane %v370, %v373
    %v375 = vmul.f32 %v358, %v374
    %v376 = vlaneseq
    %v377 = vshrl.u32 %v376, 7
    %v378 = vsub.s32 0, %v377
    %v379 = vrot.slane %v349, %v378
    %v380 = vadd.f32 %v375, %v379
    %v381 = vmax.f32 %v380, 0.0
    %v382 = vld [vmem:[#allocation5 + $0xa0] sm:$0xff]
    %v383 = vld [vmem:[#allocation5 + $0xa8] sm:$0xff]
    %v384 = vld [vmem:[#allocation5 + $0xb0] sm:$0xff]
    %v385 = vld [vmem:[#allocation5 + $0xb8] sm:$0xff]
    %v386 = vld [vmem:[#allocation5 + $0xc0] sm:$0xff]
    %v387 = vld [vmem:[#allocation5 + $0xc8] sm:$0xff]
    %v388 = vld [vmem:[#allocation5 + $0xd0] sm:$0xff]
    %v389 = vld [vmem:[#allocation5 + $0xd8] sm:$0xff]
    %v390 = vld [vmem:[#allocation5 + $0xe0] sm:$0x1]
    %v391 = vlaneseq
    %v392 = vshrl.u32 %v391, 7
    %v393 = vsub.s32 0, %v392
    %v394 = vrot.slane %v390, %v393
    %v396 = vsel %vm122, %v381, 0
    %398 = vmatprep.subr.mxu0 0.0
    %399 = vmatpush1.msra.mxu0 %v382
    %400 = vmatprep.subr.mxu0 0.0
    %401 = vmatpush1.msra.mxu0 %v383
    %402 = vmatprep.subr.mxu0 0.0
    %403 = vmatpush1.msra.mxu0 %v384
    %404 = vmatprep.subr.mxu0 0.0
    %405 = vmatpush1.msra.mxu0 %v385
    %406 = vmatprep.subr.mxu0 0.0
    %407 = vmatpush1.msra.mxu0 %v386
    %408 = vmatprep.subr.mxu0 0.0
    %409 = vmatpush1.msra.mxu0 %v387
    %410 = vmatprep.subr.mxu0 0.0
    %411 = vmatpush1.msra.mxu0 %v388
    %412 = vmatprep.subr.mxu0 0.0
    %413 = vmatpush1.msra.mxu0 %v389
    %414 = vmatprep.subr.mxu0 0.0
    %415 = vmatpush1.msra.mxu0 0.0
    %416 = vmatprep.subr.mxu0 0.0
    %417 = vmatpush1.msra.mxu0 0.0
    %418 = vmatprep.subr.mxu0 0.0
    %419 = vmatpush1.msra.mxu0 0.0
    %420 = vmatprep.subr.mxu0 0.0
    %421 = vmatpush1.msra.mxu0 0.0
    %422 = vmatprep.subr.mxu0 0.0
    %423 = vmatpush1.msra.mxu0 0.0
    %424 = vmatprep.subr.mxu0 0.0
    %425 = vmatpush1.msra.mxu0 0.0
    %426 = vmatprep.subr.mxu0 0.0
    %427 = vmatpush1.msra.mxu0 0.0
    %428 = vmatprep.subr.mxu0 0.0
    %429 = vmatpush1.msra.mxu0 0.0
    %430 = vmatprep.subr.mxu0 0.0
    %431 = vmatpush1.msra.mxu0 0.0
    %432 = vmatprep.subr.mxu0 0.0
    %433 = vmatpush1.msra.mxu0 0.0
    %434 = vmatprep.subr.mxu0 0.0
    %435 = vmatpush1.msra.mxu0 0.0
    %436 = vmatprep.subr.mxu0 0.0
    %437 = vmatpush1.msra.mxu0 0.0
    %438 = vmatprep.subr.mxu0 0.0
    %439 = vmatpush1.msra.mxu0 0.0
    %440 = vmatprep.subr.mxu0 0.0
    %441 = vmatpush1.msra.mxu0 0.0
    %442 = vmatprep.subr.mxu0 0.0
    %443 = vmatpush1.msra.mxu0 0.0
    %444 = vmatprep.subr.mxu0 0.0
    %445 = vmatpush1.msra.mxu0 0.0
    %446 = vmatprep.subr.mxu0 0.0
    %447 = vmatpush1.msra.mxu0 0.0
    %448 = vmatprep.subr.mxu0 0.0
    %449 = vmatpush1.msra.mxu0 0.0
    %450 = vmatprep.subr.mxu0 0.0
    %451 = vmatpush1.msra.mxu0 0.0
    %452 = vmatprep.subr.mxu0 0.0
    %453 = vmatpush1.msra.mxu0 0.0
    %454 = vmatprep.subr.mxu0 0.0
    %455 = vmatpush1.msra.mxu0 0.0
    %456 = vmatprep.subr.mxu0 0.0
    %457 = vmatpush1.msra.mxu0 0.0
    %458 = vmatprep.subr.mxu0 0.0
    %459 = vmatpush1.msra.mxu0 0.0
    %460 = vmatprep.subr.mxu0 0.0
    %461 = vmatpush1.msra.mxu0 0.0
    %462 = vmatprep.mubr.f32.mxu0 0.0
    %463 = vmatmul.mubr.f32.gmra.mrb[0].mxu0 %v396
    %v464 = vpop.f32.mrb[0].mxu0
    %v465 = vadd.f32 %v394, %v464
    %v466 = vpop.f32.mrb[0].mxu0
    %467 = vdwg.mxu0
    %v468 = vsel %vm46, %v465, -inf
    %469 = vmax.xlane.f32.xlu0 %v468
    %v470 = vpop.xlane.xlu0 %469
    %v471 = vsub.f32 %v465, %v470
    %v472 = vmul.f32 %v471, 1.442695
    %v473 = vpow.pop %v472
    %v474 = vsel %vm46, %v473, 0.0
    %475 = vadd.xlane.f32.xlu0 %v474
    %v476 = vpop.xlane.xlu0 %475
    %v477 = vrcp.pop %v476
    %v478 = vmul.f32 %v473, %v477
    %479 = vst.msk [vmem:[#allocation7] sm:$0xff] %vm46, %v478
    // Predicated region
    $region18: #{prediction_forward.1} parent=1 // pred_check
      _
    $region19: #{prediction_forward.1} parent=1 // pred_check_branch
      %481 = sbr.rel (0) target = $region21
    $region20: #{prediction_forward.1} parent=1 // pred_region
      %s483 = ssub.s32 128, 128
      %484 = vsyncadd [#allocation4], %s483
      %s486 = sshll.u32 [#allocation7], 4
      %s487 = int_to_ptr.vmem [resolvable:$true] %s486
      %489 = dma.vmem_to_hbm [thread:$0]  %s487, 128, %s2, [#allocation4]
    $region21: #{prediction_forward.1} parent=1 // pred_fallthru
      _
    // Predicated region
    $region22: #{prediction_forward.1} parent=1 // pred_check
      _
    $region23: #{prediction_forward.1} parent=1 // pred_check_branch
      %491 = sbr.rel (0) target = $region25
    $region24: #{prediction_forward.1} parent=1 // pred_region
      %s493 = ssub.s32 128, 128
      %494 = vsyncadd [#allocation9], %s493
      %s496 = sshll.u32 [#allocation8], 4
      %s497 = int_to_ptr.vmem [resolvable:$true] %s496
      %499 = dma.vmem_to_hbm [thread:$0]  %s497, 128, %s3, [#allocation9]
    $region25: #{prediction_forward.1} parent=1 // pred_fallthru
      _
    // Predicated region
    $region26: #{prediction_forward.1} parent=1 // pred_check
      _
    $region27: #{prediction_forward.1} parent=1 // pred_check_branch
      %501 = sbr.rel (0) target = $region29
    $region28: #{prediction_forward.1} parent=1 // pred_region
      %502 = dma.done [#allocation4], 128
    $region29: #{prediction_forward.1} parent=1 // pred_fallthru
      _
    // Predicated region
    $region30: #{prediction_forward.1} parent=1 // pred_check
      _
    $region31: #{prediction_forward.1} parent=1 // pred_check_branch
      %504 = sbr.rel (0) target = $region33
    $region32: #{prediction_forward.1} parent=1 // pred_region
      %505 = dma.done [#allocation9], 128
    $region33: #{prediction_forward.1} parent=1 // pred_fallthru
      _
    %506 = vsyncpa [#allocation3], 1
    %507 = vsyncpa [#allocation6], 1
    %508 = vsyncpa [#allocation4], 1
    %509 = vsyncpa [#allocation9], 1

</llo_original>
